<compile_context>
chip_gen: v7x
topology: tpu7x:2x2x1
jax: 0.10.0
libtpu: 0.0.40
codegen_flags: <defaults>
</compile_context>

<pallas_src>
import jax
import jax.numpy as jnp
import numpy as np
from jax.experimental import pallas as pl
from jax.experimental.pallas import tpu as pltpu

_LANE = 128                             # lane width: last dim of every block
_TARGET_BLOCK_BYTES = 2 * 1024 * 1024   # ~2 MiB block; 4 pipeline buffers = 8 MiB
_VMEM_LIMIT_BYTES = 32 * 1024 * 1024    # explicit scoped-VMEM cap (safe on all gens)

# Tri-state: None = not probed yet, True/False after the first call.
_ALIAS_PATH_OK = None


# ----------------------------------------------------------------------------
# Zero-copy path: aliased output, no DMAs, no compute.
# ----------------------------------------------------------------------------
def _alias_noop_kernel(x_ref, o_ref):
    # Output aliases the input buffer (input_output_aliases={0: 0}); flatten
    # is a pure metadata op, so no bytes need to move.  touch() pins a fake
    # read/write dependency on the aliased output so it is ordered after this
    # call without emitting any DMA.
    del x_ref
    pltpu.touch(o_ref)


def _flatten_zero_copy(x2):
    n, d = x2.shape
    return pl.pallas_call(
        _alias_noop_kernel,
        out_shape=jax.ShapeDtypeStruct((n, d), x2.dtype),
        in_specs=[pl.BlockSpec(memory_space=pl.ANY)],
        out_specs=pl.BlockSpec(memory_space=pl.ANY),
        input_output_aliases={0: 0},
        cost_estimate=pl.CostEstimate(
            flops=0, transcendentals=0, bytes_accessed=0),
    )(x2)


# ----------------------------------------------------------------------------
# Fallback path: tiled HBM->HBM copy at the HBM roofline.
# ----------------------------------------------------------------------------
def _copy_kernel(x_ref, o_ref):
    o_ref[...] = x_ref[...]


def _round_down(v, m):
    return (v // m) * m


def _round_up(v, m):
    return ((v + m - 1) // m) * m


def _pick_tile_rows(rows, itemsize):
    """Row tile for the (rows, 128) copy path.

    Targets ~2 MiB blocks (v5e-safe: 4 double-buffered blocks = 8 MiB < 16 MiB
    default scoped VMEM; also well under v7x's 32 MiB scoped / 64 MiB physical),
    keeps the tile a multiple of 32 sublanes (legal for f32 / bf16 / int8
    packing), prefers an exact divisor of `rows` (no masked partial last
    block), and ensures >= 2 grid blocks when possible so both v7x
    TensorCores get work.
    """
    max_rows = max(32, _TARGET_BLOCK_BYTES // (_LANE * itemsize))
    if rows <= 32:
        return rows                                   # tiny: one full-dim block
    cap = min(rows, max_rows, _round_up(pl.cdiv(rows, 2), 32))
    cap32 = max(32, _round_down(cap, 32))
    for t in range(cap32, 31, -32):                   # largest exact divisor
        if rows % t == 0:
            return t
    return cap32                                      # masked tail (rare)


def _flatten_copy(x2):
    """Tiled copy of a 2-D (n, d) array; returns a fresh (n, d) array."""
    n, d = x2.shape
    dtype = x2.dtype
    itemsize = np.dtype(dtype).itemsize
    total = n * d
    compiler_params = pltpu.CompilerParams(
        dimension_semantics=("parallel",),            # v7x: split across both TCs
        vmem_limit_bytes=_VMEM_LIMIT_BYTES,
    )
    cost = pl.CostEstimate(
        flops=0, transcendentals=0, bytes_accessed=2 * total * itemsize)

    if total % _LANE == 0:
        # Lane-dense main path: reinterpret as (rows, 128) (free, row-major).
        rows = total // _LANE
        tile_rows = _pick_tile_rows(rows, itemsize)
        x_flat = x2.reshape(rows, _LANE)
        out = pl.pallas_call(
            _copy_kernel,
            out_shape=jax.ShapeDtypeStruct((rows, _LANE), dtype),
            grid=(pl.cdiv(rows, tile_rows),),
            in_specs=[pl.BlockSpec((tile_rows, _LANE), lambda i: (i, 0))],
            out_specs=pl.BlockSpec((tile_rows, _LANE), lambda i: (i, 0)),
            compiler_params=compiler_params,
            cost_estimate=cost,
        )(x_flat)
        return out.reshape(n, d)

    # Flat size not a multiple of 128: tile along the batch axis with a
    # full-width last-dim block (block dim == full array dim is always legal),
    # so large odd shapes are still pipelined instead of needing the whole
    # array resident in VMEM.
    row_bytes = max(1, d * itemsize)
    bn_target = max(1, _TARGET_BLOCK_BYTES // row_bytes)
    if bn_target >= n or n <= 8:
        bn = n
    else:
        bn = max(8, _round_down(bn_target, 8))
    # TODO(synk): if a single flattened row exceeds ~2 MiB and d % 128 != 0,
    # this block is still larger than the target; an element-padded path would
    # be needed for that pathological case.
    return pl.pallas_call(
        _copy_kernel,
        out_shape=jax.ShapeDtypeStruct((n, d), dtype),
        grid=(pl.cdiv(n, bn),),
        in_specs=[pl.BlockSpec((bn, d), lambda i: (i, 0))],
        out_specs=pl.BlockSpec((bn, d), lambda i: (i, 0)),
        compiler_params=compiler_params,
        cost_estimate=cost,
    )(x2)


# ----------------------------------------------------------------------------
# Public wrapper: equivalent of torch.flatten(x, 1).
# ----------------------------------------------------------------------------
def flatten_pallas(x):
    """Equivalent of torch.flatten(x, 1) for a contiguous (N, ...) tensor."""
    global _ALIAS_PATH_OK
    n = x.shape[0]
    d = int(np.prod(x.shape[1:])) if x.ndim > 1 else 1
    x2 = jnp.reshape(x, (n, d))   # free: contiguous row-major reinterpret

    if _ALIAS_PATH_OK is None:
        # Probe the zero-copy alias path once; if lowering/execution is not
        # supported on this jax version, permanently fall back to the tiled
        # roofline copy.
        try:
            out = jax.block_until_ready(_flatten_zero_copy(x2))
            _ALIAS_PATH_OK = True
            return out
        except Exception:
            _ALIAS_PATH_OK = False
            x2 = jnp.reshape(x, (n, d))   # re-make in case x2 was donated

    if _ALIAS_PATH_OK:
        return _flatten_zero_copy(x2)
    return _flatten_copy(x2)


if __name__ == "__main__":
    key = jax.random.PRNGKey(0)
    k0, k1, k2 = jax.random.split(key, 3)

    # Main shape: small NCHW activation entering Flatten.
    N, C, H, W = 2, 4, 16, 16
    x = jax.random.normal(k0, (N, C, H, W), dtype=jnp.float32)
    ref = np.asarray(x).reshape(N, C * H * W)   # torch.flatten(x, 1) reference

    out = jax.block_until_ready(flatten_pallas(x))
    assert out.shape == (N, C * H * W), out.shape
    assert np.array_equal(np.asarray(out), ref)

    # Shape whose flattened size is NOT a multiple of 128 (robustness check).
    x_odd = jax.random.normal(k1, (2, 3, 5, 7), dtype=jnp.float32)
    ref_odd = np.asarray(x_odd).reshape(2, 3 * 5 * 7)
    out_odd = jax.block_until_ready(flatten_pallas(x_odd))
    assert out_odd.shape == (2, 3 * 5 * 7), out_odd.shape
    assert np.array_equal(np.asarray(out_odd), ref_odd)

    # Also exercise the explicit tiled-copy fallback path directly:
    #   (a) 128-divisible case with >= 2 grid blocks (both v7x TCs active),
    #   (b) non-128-divisible batch-tiled case.
    x_big = jax.random.normal(k2, (4, 8, 32, 32), dtype=jnp.float32)
    ref_big = np.asarray(x_big).reshape(4, 8 * 32 * 32)
    out_big = jax.block_until_ready(_flatten_copy(jnp.reshape(x_big, (4, -1))))
    assert np.array_equal(np.asarray(out_big), ref_big)

    out_odd2 = jax.block_until_ready(_flatten_copy(jnp.reshape(x_odd, (2, -1))))
    assert np.array_equal(np.asarray(out_odd2), ref_odd)

    print("KERNEL_OK")
</pallas_src>

<mosaic_0001>
module attributes {stable_mosaic.version = 11 : i64} {
  func.func @_alias_noop_kernel(%arg0: memref<2x1024xf32, #tpu.memory_space<any>>, %arg1: memref<2x1024xf32, #tpu.memory_space<any>>) attributes {dimension_semantics = [], scalar_prefetch = 0 : i64, scratch_operands = 0 : i64, tpu.core_type = #tpu.core_type<tc>} {
    return
  }
}

module attributes {stable_mosaic.version = 11 : i64} {
  func.func @_copy_kernel(%arg0: i32, %arg1: memref<16x128xf32, #tpu.memory_space<vmem>>, %arg2: memref<16x128xf32, #tpu.memory_space<vmem>>) attributes {dimension_semantics = [#tpu.dimension_semantics<parallel>], iteration_bounds = array<i64: 1>, scalar_prefetch = 0 : i64, scratch_operands = 0 : i64, tpu.core_type = #tpu.core_type<tc>, window_params = [{transform_indices = @transform_0, window_bounds = array<i64: 16, 128>}, {transform_indices = @transform_1, window_bounds = array<i64: 16, 128>}]} {
    %c0 = arith.constant 0 : index
    %c0_0 = arith.constant 0 : index
    %0 = vector.load %arg1[%c0, %c0_0] : memref<16x128xf32, #tpu.memory_space<vmem>>, vector<16x128xf32>
    %c0_1 = arith.constant 0 : index
    %c0_2 = arith.constant 0 : index
    %1 = vector.load %arg2[%c0_1, %c0_2] : memref<16x128xf32, #tpu.memory_space<vmem>>, vector<16x128xf32>
    tpu.vector_store %arg2[%c0_1, %c0_2], %0 {strides = array<i32>} : memref<16x128xf32, #tpu.memory_space<vmem>>, vector<16x128xf32>,
    return
  }
  func.func @transform_0(%arg0: i32) -> (i32, i32) {
    %c0_i32 = arith.constant 0 : i32
    %c0_i32_0 = arith.constant 0 : i32
    return %arg0, %c0_i32 : i32, i32
  }
  func.func @transform_1(%arg0: i32) -> (i32, i32) {
    %c0_i32 = arith.constant 0 : i32
    %c0_i32_0 = arith.constant 0 : i32
    return %arg0, %c0_i32 : i32, i32
  }
}

</mosaic_0001>

<llo_original>
// kernel: tpu_custom_call.1
$region0: #{tpu_custom_call.1}
  #allocation0 [shape = 'u32[]', space=smem, size = 0x4, offset = 0x4, fixed_abs, tag = 'smem constant byte address 0x4 - core index']
  #allocation1 [shape = 'u32[144,128]{1,0:T(1,128)}', space=vmem, size = 0x12000, scoped, tag = 'internal scratch']
  %s0 = inlined_call_operand.hbm [shape: f32[2,1024], index: 0, kind: input, shape index: {}, may-alias: {0,1}]
  %s1 = inlined_call_operand.hbm [shape: f32[2,1024], index: 1, kind: output, shape index: {}, may-alias: {0,1}]
  %s2 = sld [smem:[#allocation0]]
  $region2: #{tpu_custom_call.1} parent=0
    _
  %s4 = ssub.s32 1, %s2
  %s5 = scalar_select 0, %s4, %s2

// kernel: tpu_custom_call.1
$region0: #{tpu_custom_call.1}
  #allocation0 [shape = 'u32[]', space=smem, size = 0x4, offset = 0x4, fixed_abs, tag = 'smem constant byte address 0x4 - core index']
  #allocation1 [shape = 'u32[144,128]{1,0:T(1,128)}', space=vmem, size = 0x12000, scoped, tag = 'internal scratch']
  %s0 = inlined_call_operand.hbm [shape: f32[16,128], index: 0, kind: input, shape index: {}]
  %s1 = inlined_call_operand.hbm [shape: f32[16,128], index: 1, kind: output, shape index: {}]
  %s2 = sld [smem:[#allocation0]]
  $region18: #{tpu_custom_call.1} parent=0
    _
  %s4 = ssub.s32 1, %s2
  %s5 = scalar_select 0, %s4, %s2
  $region1: #{tpu_custom_call.1} parent=0
    #allocation2 [shape = 'u8[8192]{0}', space=vmem, size = 0x2000, scoped, tag = 'input window, operand 0, single buffered']
    #allocation3 [shape = 's32[1]{0}', space=sflag, size = 0x4, scoped, tag = 'scoped memory for tpu_custom_call.1']
    #allocation4 [shape = 's32[1]{0}', space=sflag, size = 0x4, scoped, tag = 'scoped memory for tpu_custom_call.1']
    #allocation5 [shape = 'u8[8192]{0}', space=vmem, size = 0x2000, scoped, tag = 'output window, operand 0, single buffered']
    %6 = vsyncpa [#allocation3], 0
    %7 = vsyncpa [#allocation4], 0
    // Predicated region
    $region2: #{tpu_custom_call.1} parent=1 // pred_check
      _
    $region3: #{tpu_custom_call.1} parent=1 // pred_check_branch
      %9 = sbr.rel (0) target = $region5
    $region4: #{tpu_custom_call.1} parent=1 // pred_region
      %s11 = ssub.s32 256, 256
      %12 = vsyncadd [#allocation3], %s11
      %s13 = sshll.u32 [#allocation2], 4
      %s14 = int_to_ptr.vmem [resolvable:$true] %s13
      %19 = dma.hbm_to_vmem [thread:$0]  %s0, 256, %s14, [#allocation3], 128, 128, 8
    $region5: #{tpu_custom_call.1} parent=1 // pred_fallthru
      _
    // Predicated region
    $region6: #{tpu_custom_call.1} parent=1 // pred_check
      _
    $region7: #{tpu_custom_call.1} parent=1 // pred_check_branch
      %21 = sbr.rel (0) target = $region9
    $region8: #{tpu_custom_call.1} parent=1 // pred_region
      %22 = dma.done [#allocation3], 256
    $region9: #{tpu_custom_call.1} parent=1 // pred_fallthru
      _
    %v23 = vld [vmem:[#allocation2] sm:$0xff]
    %v24 = vld [vmem:[#allocation2 + $0x8] sm:$0xff]
    %25 = vst [vmem:[#allocation5] sm:$0xff] %v23
    %26 = vst [vmem:[#allocation5 + $0x8] sm:$0xff] %v24
    // Predicated region
    $region10: #{tpu_custom_call.1} parent=1 // pred_check
      _
    $region11: #{tpu_custom_call.1} parent=1 // pred_check_branch
      %28 = sbr.rel (0) target = $region13
    $region12: #{tpu_custom_call.1} parent=1 // pred_region
      %s30 = ssub.s32 256, 256
      %31 = vsyncadd [#allocation4], %s30
      %s32 = sshll.u32 [#allocation5], 4
      %s33 = int_to_ptr.vmem [resolvable:$true] %s32
      %38 = dma.vmem_to_hbm [thread:$0]  %s33, 256, %s1, [#allocation4], 128, 128, 8
    $region13: #{tpu_custom_call.1} parent=1 // pred_fallthru
      _
    // Predicated region
    $region14: #{tpu_custom_call.1} parent=1 // pred_check
      _
    $region15: #{tpu_custom_call.1} parent=1 // pred_check_branch
      %40 = sbr.rel (0) target = $region17
    $region16: #{tpu_custom_call.1} parent=1 // pred_region
      %41 = dma.done [#allocation4], 256
    $region17: #{tpu_custom_call.1} parent=1 // pred_fallthru
      _
    %42 = vsyncpa [#allocation3], 1
    %43 = vsyncpa [#allocation4], 1

</llo_original>
